<compile_context>
chip_gen: v7x
topology: tpu7x:2x2x1
jax: 0.10.0
libtpu: 0.0.40
codegen_flags: <defaults>
</compile_context>

<pallas_src>
import functools

import jax
import jax.numpy as jnp
from jax.experimental import pallas as pl
from jax.experimental.pallas import tpu as pltpu


def _critic_kernel(s_ref, a_ref, w1s_ref, w1a_ref, b1_ref,
                   w2_ref, b2_ref, w3_ref, b3_ref, o_ref):
    """Fused 3-layer MLP; input concat folded into the first matmul."""
    # Layer 1: [tb, sd] @ [sd, H] + [tb, ad] @ [ad, H]  (== concat(s, a) @ W1)
    h1 = (jnp.dot(s_ref[...], w1s_ref[...], preferred_element_type=jnp.float32)
          + jnp.dot(a_ref[...], w1a_ref[...], preferred_element_type=jnp.float32)
          + b1_ref[...])
    h1 = jnp.maximum(h1, 0.0)

    # Layer 2
    h2 = jnp.dot(h1, w2_ref[...], preferred_element_type=jnp.float32) + b2_ref[...]
    h2 = jnp.maximum(h2, 0.0)

    # Layer 3 (output dim = 1)
    out = jnp.dot(h2, w3_ref[...], preferred_element_type=jnp.float32) + b3_ref[...]
    o_ref[...] = out.astype(o_ref.dtype)


@functools.partial(jax.jit, static_argnames=("batch_tile",))
def critic_forward(state, action, params, batch_tile=1024):
    """JAX wrapper reproducing Critic.forward semantics.

    state  : [..., state_dim]  (flattened to [-1, state_dim], like .view)
    action : [..., action_dim] (flattened to [-1, action_dim])
    returns: [B, 1] float32
    """
    w1, b1, w2, b2, w3, b3 = params
    in_dim, hidden = w1.shape

    s2 = state.reshape(-1, state.shape[-1]).astype(jnp.float32)
    a2 = action.reshape(-1, action.shape[-1]).astype(jnp.float32)
    state_dim = s2.shape[1]
    action_dim = a2.shape[1]
    assert state_dim + action_dim == in_dim

    # Row-split of W1 (tiny, once per call) so the concat never hits HBM.
    w1s = w1[:state_dim]
    w1a = w1[state_dim:]

    B = s2.shape[0]
    # Tile selection:
    #  - small batch: one grid step covering the whole batch, rounded up to
    #    the 8-sublane granule (boundary block handles the few extra rows).
    #  - large batch: 1024-row tiles (multiple of 8/128/256 -> aligned on
    #    v5e/v6e/v7x) to amortize the per-grid-step overhead.  Ragged tail is
    #    a boundary block; no host/HBM padding copies.
    if B <= batch_tile:
        tb = max(8, ((B + 7) // 8) * 8)
    else:
        tb = batch_tile
    grid = (pl.cdiv(B, tb),)

    out = pl.pallas_call(
        _critic_kernel,
        out_shape=jax.ShapeDtypeStruct((B, 1), jnp.float32),
        grid_spec=pltpu.PrefetchScalarGridSpec(
            num_scalar_prefetch=0,
            grid=grid,
            in_specs=[
                pl.BlockSpec((tb, state_dim), lambda i: (i, 0)),       # state tile
                pl.BlockSpec((tb, action_dim), lambda i: (i, 0)),      # action tile
                pl.BlockSpec((state_dim, hidden), lambda i: (0, 0)),   # W1[:sd]
                pl.BlockSpec((action_dim, hidden), lambda i: (0, 0)),  # W1[sd:]
                pl.BlockSpec((1, hidden), lambda i: (0, 0)),           # b1
                pl.BlockSpec((hidden, hidden), lambda i: (0, 0)),      # W2
                pl.BlockSpec((1, hidden), lambda i: (0, 0)),           # b2
                pl.BlockSpec((hidden, 1), lambda i: (0, 0)),           # W3
                pl.BlockSpec((1, 1), lambda i: (0, 0)),                # b3
            ],
            out_specs=pl.BlockSpec((tb, 1), lambda i: (i, 0)),
        ),
        compiler_params=pltpu.CompilerParams(
            dimension_semantics=("parallel",)),
    )(s2, a2, w1s, w1a, b1, w2, b2, w3, b3)

    return out


def init_critic_params(key, state_dim, hidden_size, action_dim):
    """Parameter init mirroring the PyTorch module.

    nn.Linear weights are re-initialized to N(0, 0.01); biases keep their
    default init (uniform in +-1/sqrt(fan_in)).  Stored as [in, out]
    (transposed vs. PyTorch's [out, in]) so the kernel does y = x @ W + b.
    """
    in_dim = state_dim + action_dim
    k = jax.random.split(key, 6)

    def w_init(k_, fan_in, fan_out):
        return (0.01 * jax.random.normal(k_, (fan_in, fan_out))).astype(jnp.float32)

    def b_init(k_, fan_in, fan_out):
        bound = 1.0 / jnp.sqrt(fan_in)
        return jax.random.uniform(
            k_, (1, fan_out), minval=-bound, maxval=bound).astype(jnp.float32)

    w1 = w_init(k[0], in_dim, hidden_size)
    b1 = b_init(k[1], in_dim, hidden_size)
    w2 = w_init(k[2], hidden_size, hidden_size)
    b2 = b_init(k[3], hidden_size, hidden_size)
    w3 = w_init(k[4], hidden_size, 1)
    b3 = b_init(k[5], hidden_size, 1)
    return (w1, b1, w2, b2, w3, b3)


def _reference_forward(state, action, params):
    """Pure-JAX reference for correctness checking."""
    w1, b1, w2, b2, w3, b3 = params
    s2 = state.reshape(-1, state.shape[-1])
    a2 = action.reshape(-1, action.shape[-1])
    x = jnp.concatenate([s2, a2], axis=1).astype(jnp.float32)
    h1 = jnp.maximum(x @ w1 + b1, 0.0)
    h2 = jnp.maximum(h1 @ w2 + b2, 0.0)
    return h2 @ w3 + b3


if __name__ == "__main__":
    state_dim, hidden_size, action_dim = 24, 32, 8
    key = jax.random.PRNGKey(0)
    k_params, k_state, k_action = jax.random.split(key, 3)
    params = init_critic_params(k_params, state_dim, hidden_size, action_dim)

    # Case 1: small batch with extra leading dims (exercises .view(-1, dim)
    # semantics) and a batch (6) that is not a multiple of 8 -> single
    # boundary-block grid step.
    state = jax.random.normal(k_state, (3, 2, state_dim), dtype=jnp.float32)
    action = jax.random.normal(k_action, (3, 2, action_dim), dtype=jnp.float32)
    out = jax.block_until_ready(critic_forward(state, action, params))
    ref = _reference_forward(state, action, params)
    assert out.shape == (6, 1), out.shape
    assert jnp.allclose(out, ref, atol=1e-5, rtol=1e-5), ("mismatch", out, ref)

    # Case 2: larger batch exercising the multi-step tiled path with a ragged
    # final tile (1037 = 1024 + 13), no host-side padding copies.
    batch2 = 1037
    k_s2, k_a2 = jax.random.split(k_state)
    state2 = jax.random.normal(k_s2, (batch2, state_dim), dtype=jnp.float32)
    action2 = jax.random.normal(k_a2, (batch2, action_dim), dtype=jnp.float32)
    out2 = jax.block_until_ready(critic_forward(state2, action2, params))
    ref2 = _reference_forward(state2, action2, params)
    assert out2.shape == (batch2, 1), out2.shape
    assert jnp.allclose(out2, ref2, atol=1e-5, rtol=1e-5), "mismatch (tiled path)"

    print("KERNEL_OK")
</pallas_src>

<mosaic_0001>
module attributes {stable_mosaic.version = 11 : i64} {
  func.func @_critic_kernel(%arg0: i32, %arg1: memref<8x24xf32, #tpu.memory_space<vmem>>, %arg2: memref<8x8xf32, #tpu.memory_space<vmem>>, %arg3: memref<24x32xf32, #tpu.memory_space<vmem>>, %arg4: memref<8x32xf32, #tpu.memory_space<vmem>>, %arg5: memref<1x32xf32, #tpu.memory_space<vmem>>, %arg6: memref<32x32xf32, #tpu.memory_space<vmem>>, %arg7: memref<1x32xf32, #tpu.memory_space<vmem>>, %arg8: memref<32x1xf32, #tpu.memory_space<vmem>>, %arg9: memref<1x1xf32, #tpu.memory_space<vmem>>, %arg10: memref<8x1xf32, #tpu.memory_space<vmem>>) attributes {dimension_semantics = [#tpu.dimension_semantics<parallel>], iteration_bounds = array<i64: 1>, scalar_prefetch = 0 : i64, scratch_operands = 0 : i64, tpu.core_type = #tpu.core_type<tc>, window_params = [{transform_indices = @transform_0, window_bounds = array<i64: 8, 24>}, {transform_indices = @transform_1, window_bounds = array<i64: 8, 8>}, {pipeline_mode = #tpu.pipeline_mode<synchronous>, transform_indices = @transform_2, window_bounds = array<i64: 24, 32>}, {pipeline_mode = #tpu.pipeline_mode<synchronous>, transform_indices = @transform_3, window_bounds = array<i64: 8, 32>}, {pipeline_mode = #tpu.pipeline_mode<synchronous>, transform_indices = @transform_4, window_bounds = array<i64: 1, 32>}, {pipeline_mode = #tpu.pipeline_mode<synchronous>, transform_indices = @transform_5, window_bounds = array<i64: 32, 32>}, {pipeline_mode = #tpu.pipeline_mode<synchronous>, transform_indices = @transform_6, window_bounds = array<i64: 1, 32>}, {pipeline_mode = #tpu.pipeline_mode<synchronous>, transform_indices = @transform_7, window_bounds = array<i64: 32, 1>}, {pipeline_mode = #tpu.pipeline_mode<synchronous>, transform_indices = @transform_8, window_bounds = array<i64: 1, 1>}, {transform_indices = @transform_9, window_bounds = array<i64: 8, 1>}]} {
    %c0 = arith.constant 0 : index
    %c0_0 = arith.constant 0 : index
    %0 = vector.load %arg1[%c0, %c0_0] : memref<8x24xf32, #tpu.memory_space<vmem>>, vector<8x24xf32>
    %c0_1 = arith.constant 0 : index
    %c0_2 = arith.constant 0 : index
    %1 = vector.load %arg3[%c0_1, %c0_2] : memref<24x32xf32, #tpu.memory_space<vmem>>, vector<24x32xf32>
    %cst = arith.constant dense<0.000000e+00> : vector<8x32xf32>
    %2 = tpu.matmul %0, %1, %cst {dimension_numbers = #tpu.dot_dimension_numbers<[1], [0], [0], [1], [0, 0, 1, 1], [], []>} : vector<8x24xf32>, vector<24x32xf32>, vector<8x32xf32> -> vector<8x32xf32>
    %c0_3 = arith.constant 0 : index
    %c0_4 = arith.constant 0 : index
    %3 = vector.load %arg2[%c0_3, %c0_4] : memref<8x8xf32, #tpu.memory_space<vmem>>, vector<8x8xf32>
    %c0_5 = arith.constant 0 : index
    %c0_6 = arith.constant 0 : index
    %4 = vector.load %arg4[%c0_5, %c0_6] : memref<8x32xf32, #tpu.memory_space<vmem>>, vector<8x32xf32>
    %cst_7 = arith.constant dense<0.000000e+00> : vector<8x32xf32>
    %5 = tpu.matmul %3, %4, %cst_7 {dimension_numbers = #tpu.dot_dimension_numbers<[1], [0], [0], [1], [0, 0, 1, 1], [], []>} : vector<8x8xf32>, vector<8x32xf32>, vector<8x32xf32> -> vector<8x32xf32>
    %6 = arith.addf %2, %5 : vector<8x32xf32>
    %c0_8 = arith.constant 0 : index
    %c0_9 = arith.constant 0 : index
    %7 = vector.load %arg5[%c0_8, %c0_9] : memref<1x32xf32, #tpu.memory_space<vmem>>, vector<1x32xf32>
    %8 = vector.broadcast %7 : vector<1x32xf32> to vector<8x32xf32>
    %9 = arith.addf %6, %8 : vector<8x32xf32>
    %cst_10 = arith.constant 0.000000e+00 : f32
    %10 = vector.broadcast %cst_10 : f32 to vector<8x32xf32>
    %11 = arith.maximumf %9, %10 : vector<8x32xf32>
    %c0_11 = arith.constant 0 : index
    %c0_12 = arith.constant 0 : index
    %12 = vector.load %arg6[%c0_11, %c0_12] : memref<32x32xf32, #tpu.memory_space<vmem>>, vector<32x32xf32>
    %cst_13 = arith.constant dense<0.000000e+00> : vector<8x32xf32>
    %13 = tpu.matmul %11, %12, %cst_13 {dimension_numbers = #tpu.dot_dimension_numbers<[1], [0], [0], [1], [0, 0, 1, 1], [], []>} : vector<8x32xf32>, vector<32x32xf32>, vector<8x32xf32> -> vector<8x32xf32>
    %c0_14 = arith.constant 0 : index
    %c0_15 = arith.constant 0 : index
    %14 = vector.load %arg7[%c0_14, %c0_15] : memref<1x32xf32, #tpu.memory_space<vmem>>, vector<1x32xf32>
    %15 = vector.broadcast %14 : vector<1x32xf32> to vector<8x32xf32>
    %16 = arith.addf %13, %15 : vector<8x32xf32>
    %cst_16 = arith.constant 0.000000e+00 : f32
    %17 = vector.broadcast %cst_16 : f32 to vector<8x32xf32>
    %18 = arith.maximumf %16, %17 : vector<8x32xf32>
    %c0_17 = arith.constant 0 : index
    %c0_18 = arith.constant 0 : index
    %19 = vector.load %arg8[%c0_17, %c0_18] : memref<32x1xf32, #tpu.memory_space<vmem>>, vector<32x1xf32>
    %cst_19 = arith.constant dense<0.000000e+00> : vector<8x1xf32>
    %20 = tpu.matmul %18, %19, %cst_19 {dimension_numbers = #tpu.dot_dimension_numbers<[1], [0], [0], [1], [0, 0, 1, 1], [], []>} : vector<8x32xf32>, vector<32x1xf32>, vector<8x1xf32> -> vector<8x1xf32>
    %c0_20 = arith.constant 0 : index
    %c0_21 = arith.constant 0 : index
    %21 = vector.load %arg9[%c0_20, %c0_21] : memref<1x1xf32, #tpu.memory_space<vmem>>, vector<1x1xf32>
    %22 = vector.broadcast %21 : vector<1x1xf32> to vector<8x1xf32>
    %23 = arith.addf %20, %22 : vector<8x1xf32>
    %c0_22 = arith.constant 0 : index
    %c0_23 = arith.constant 0 : index
    %24 = vector.load %arg10[%c0_22, %c0_23] : memref<8x1xf32, #tpu.memory_space<vmem>>, vector<8x1xf32>
    tpu.vector_store %arg10[%c0_22, %c0_23], %23 {strides = array<i32>} : memref<8x1xf32, #tpu.memory_space<vmem>>, vector<8x1xf32>,
    return
  }
  func.func @transform_0(%arg0: i32) -> (i32, i32) {
    %c0_i32 = arith.constant 0 : i32
    %c0_i32_0 = arith.constant 0 : i32
    return %arg0, %c0_i32 : i32, i32
  }
  func.func @transform_1(%arg0: i32) -> (i32, i32) {
    %c0_i32 = arith.constant 0 : i32
    %c0_i32_0 = arith.constant 0 : i32
    return %arg0, %c0_i32 : i32, i32
  }
  func.func @transform_2(%arg0: i32) -> (i32, i32) {
    %c0_i32 = arith.constant 0 : i32
    %c0_i32_0 = arith.constant 0 : i32
    %c0_i32_1 = arith.constant 0 : i32
    return %c0_i32, %c0_i32_0 : i32, i32
  }
  func.func @transform_3(%arg0: i32) -> (i32, i32) {
    %c0_i32 = arith.constant 0 : i32
    %c0_i32_0 = arith.constant 0 : i32
    %c0_i32_1 = arith.constant 0 : i32
    return %c0_i32, %c0_i32_0 : i32, i32
  }
  func.func @transform_4(%arg0: i32) -> (i32, i32) {
    %c0_i32 = arith.constant 0 : i32
    %c0_i32_0 = arith.constant 0 : i32
    %c0_i32_1 = arith.constant 0 : i32
    return %c0_i32, %c0_i32_0 : i32, i32
  }
  func.func @transform_5(%arg0: i32) -> (i32, i32) {
    %c0_i32 = arith.constant 0 : i32
    %c0_i32_0 = arith.constant 0 : i32
    %c0_i32_1 = arith.constant 0 : i32
    return %c0_i32, %c0_i32_0 : i32, i32
  }
  func.func @transform_6(%arg0: i32) -> (i32, i32) {
    %c0_i32 = arith.constant 0 : i32
    %c0_i32_0 = arith.constant 0 : i32
    %c0_i32_1 = arith.constant 0 : i32
    return %c0_i32, %c0_i32_0 : i32, i32
  }
  func.func @transform_7(%arg0: i32) -> (i32, i32) {
    %c0_i32 = arith.constant 0 : i32
    %c0_i32_0 = arith.constant 0 : i32
    %c0_i32_1 = arith.constant 0 : i32
    return %c0_i32, %c0_i32_0 : i32, i32
  }
  func.func @transform_8(%arg0: i32) -> (i32, i32) {
    %c0_i32 = arith.constant 0 : i32
    %c0_i32_0 = arith.constant 0 : i32
    %c0_i32_1 = arith.constant 0 : i32
    return %c0_i32, %c0_i32_0 : i32, i32
  }
  func.func @transform_9(%arg0: i32) -> (i32, i32) {
    %c0_i32 = arith.constant 0 : i32
    %c0_i32_0 = arith.constant 0 : i32
    return %arg0, %c0_i32 : i32, i32
  }
}

</mosaic_0001>

<llo_original>
// kernel: critic_forward.1
$region0: #{critic_forward.1}
  #allocation0 [shape = 'u32[]', space=smem, size = 0x4, offset = 0x4, fixed_abs, tag = 'smem constant byte address 0x4 - core index']
  #allocation1 [shape = 'u32[144,128]{1,0:T(1,128)}', space=vmem, size = 0x12000, scoped, tag = 'internal scratch']
  #allocation2 [shape = 'f32[1,1]{1,0:T(1,128)S(1)}', space=vmem, size = 0x200, scoped, tag = 'scoped memory for critic_forward.1']
  %s0 = inlined_call_operand.vmem [shape: f32[6,24], index: 0, kind: input, shape index: {}]
  %s1 = inlined_call_operand.vmem [shape: f32[6,8], index: 1, kind: input, shape index: {}]
  %s2 = inlined_call_operand.vmem [shape: f32[24,32], index: 2, kind: input, shape index: {}]
  %s3 = inlined_call_operand.vmem [shape: f32[8,32], index: 3, kind: input, shape index: {}]
  %s4 = inlined_call_operand.vmem [shape: f32[1,32], index: 4, kind: input, shape index: {}]
  %s5 = inlined_call_operand.vmem [shape: f32[32,32], index: 5, kind: input, shape index: {}]
  %s6 = inlined_call_operand.vmem [shape: f32[1,32], index: 6, kind: input, shape index: {}]
  %s7 = inlined_call_operand.vmem [shape: f32[32,1], index: 7, kind: input, shape index: {}]
  %s8 = inlined_call_operand.<no memory space> [shape: f32[1,1], index: 8, kind: input, shape index: {}]
  %s9 = inlined_call_operand.vmem [shape: f32[6,1], index: 9, kind: output, shape index: {}]
  %s10 = sld [smem:[#allocation0]]
  $region46: #{critic_forward.1} parent=0
    _
  %s12 = ssub.s32 1, %s10
  %s13 = scalar_select 0, %s12, %s10
  %v14 = vstv %s8
  %15 = vst [vmem:[#allocation2] sm:$0x1] %v14
  // Predicated region
  $region2: #{critic_forward.1} parent=0 // pred_check
    _
  $region3: #{critic_forward.1} parent=0 // pred_check_branch
    %17 = sbr.rel (0) target = $region5
  $region4: #{critic_forward.1} parent=0 // pred_region
    _
  $region5: #{critic_forward.1} parent=0 // pred_fallthru
    _
  // Predicated region
  $region6: #{critic_forward.1} parent=0 // pred_check
    _
  $region7: #{critic_forward.1} parent=0 // pred_check_branch
    %19 = sbr.rel (0) target = $region9
  $region8: #{critic_forward.1} parent=0 // pred_region
    _
  $region9: #{critic_forward.1} parent=0 // pred_fallthru
    _
  // Predicated region
  $region10: #{critic_forward.1} parent=0 // pred_check
    _
  $region11: #{critic_forward.1} parent=0 // pred_check_branch
    %21 = sbr.rel (0) target = $region13
  $region12: #{critic_forward.1} parent=0 // pred_region
    _
  $region13: #{critic_forward.1} parent=0 // pred_fallthru
    _
  // Predicated region
  $region14: #{critic_forward.1} parent=0 // pred_check
    _
  $region15: #{critic_forward.1} parent=0 // pred_check_branch
    %23 = sbr.rel (0) target = $region17
  $region16: #{critic_forward.1} parent=0 // pred_region
    _
  $region17: #{critic_forward.1} parent=0 // pred_fallthru
    _
  // Predicated region
  $region18: #{critic_forward.1} parent=0 // pred_check
    _
  $region19: #{critic_forward.1} parent=0 // pred_check_branch
    %25 = sbr.rel (0) target = $region21
  $region20: #{critic_forward.1} parent=0 // pred_region
    _
  $region21: #{critic_forward.1} parent=0 // pred_fallthru
    _
  // Predicated region
  $region22: #{critic_forward.1} parent=0 // pred_check
    _
  $region23: #{critic_forward.1} parent=0 // pred_check_branch
    %27 = sbr.rel (0) target = $region25
  $region24: #{critic_forward.1} parent=0 // pred_region
    _
  $region25: #{critic_forward.1} parent=0 // pred_fallthru
    _
  // Predicated region
  $region26: #{critic_forward.1} parent=0 // pred_check
    _
  $region27: #{critic_forward.1} parent=0 // pred_check_branch
    %29 = sbr.rel (0) target = $region29
  $region28: #{critic_forward.1} parent=0 // pred_region
    _
  $region29: #{critic_forward.1} parent=0 // pred_fallthru
    _
  // Predicated region
  $region30: #{critic_forward.1} parent=0 // pred_check
    _
  $region31: #{critic_forward.1} parent=0 // pred_check_branch
    %31 = sbr.rel (0) target = $region33
  $region32: #{critic_forward.1} parent=0 // pred_region
    _
  $region33: #{critic_forward.1} parent=0 // pred_fallthru
    _
  // Predicated region
  $region34: #{critic_forward.1} parent=0 // pred_check
    _
  $region35: #{critic_forward.1} parent=0 // pred_check_branch
    %33 = sbr.rel (0) target = $region37
  $region36: #{critic_forward.1} parent=0 // pred_region
    _
  $region37: #{critic_forward.1} parent=0 // pred_fallthru
    _
  %v34 = vld [vmem:[%s0] sm:$0xff]
  %v35 = vld [vmem:[%s2] sm:$0xff]
  %v36 = vld [vmem:[%s2 + $0x8] sm:$0xff]
  %v37 = vld [vmem:[%s2 + $0x10] sm:$0xff]
  %v38 = vld [vmem:[%s1] sm:$0xff]
  %v39 = vld [vmem:[%s3] sm:$0xff]
  %vm40 = vcmask 64512
  %v42 = vsel %vm40, %v38, 0
  %44 = vmatprep.subr.mxu0 0.0
  %45 = vmatpush1.msra.mxu0 %v39
  %46 = vmatprep.subr.mxu0 0.0
  %47 = vmatpush1.msra.mxu0 0.0
  %48 = vmatprep.subr.mxu0 0.0
  %49 = vmatpush1.msra.mxu0 0.0
  %50 = vmatprep.subr.mxu0 0.0
  %51 = vmatpush1.msra.mxu0 0.0
  %52 = vmatprep.subr.mxu0 0.0
  %53 = vmatpush1.msra.mxu0 0.0
  %54 = vmatprep.subr.mxu0 0.0
  %55 = vmatpush1.msra.mxu0 0.0
  %56 = vmatprep.subr.mxu0 0.0
  %57 = vmatpush1.msra.mxu0 0.0
  %58 = vmatprep.subr.mxu0 0.0
  %59 = vmatpush1.msra.mxu0 0.0
  %60 = vmatprep.subr.mxu0 0.0
  %61 = vmatpush1.msra.mxu0 0.0
  %62 = vmatprep.subr.mxu0 0.0
  %63 = vmatpush1.msra.mxu0 0.0
  %64 = vmatprep.subr.mxu0 0.0
  %65 = vmatpush1.msra.mxu0 0.0
  %66 = vmatprep.subr.mxu0 0.0
  %67 = vmatpush1.msra.mxu0 0.0
  %68 = vmatprep.subr.mxu0 0.0
  %69 = vmatpush1.msra.mxu0 0.0
  %70 = vmatprep.subr.mxu0 0.0
  %71 = vmatpush1.msra.mxu0 0.0
  %72 = vmatprep.subr.mxu0 0.0
  %73 = vmatpush1.msra.mxu0 0.0
  %74 = vmatprep.subr.mxu0 0.0
  %75 = vmatpush1.msra.mxu0 0.0
  %76 = vmatprep.subr.mxu0 0.0
  %77 = vmatpush1.msra.mxu0 0.0
  %78 = vmatprep.subr.mxu0 0.0
  %79 = vmatpush1.msra.mxu0 0.0
  %80 = vmatprep.subr.mxu0 0.0
  %81 = vmatpush1.msra.mxu0 0.0
  %82 = vmatprep.subr.mxu0 0.0
  %83 = vmatpush1.msra.mxu0 0.0
  %84 = vmatprep.subr.mxu0 0.0
  %85 = vmatpush1.msra.mxu0 0.0
  %86 = vmatprep.subr.mxu0 0.0
  %87 = vmatpush1.msra.mxu0 0.0
  %88 = vmatprep.subr.mxu0 0.0
  %89 = vmatpush1.msra.mxu0 0.0
  %90 = vmatprep.subr.mxu0 0.0
  %91 = vmatpush1.msra.mxu0 0.0
  %92 = vmatprep.subr.mxu0 0.0
  %93 = vmatpush1.msra.mxu0 0.0
  %94 = vmatprep.subr.mxu0 0.0
  %95 = vmatpush1.msra.mxu0 0.0
  %96 = vmatprep.subr.mxu0 0.0
  %97 = vmatpush1.msra.mxu0 0.0
  %98 = vmatprep.subr.mxu0 0.0
  %99 = vmatpush1.msra.mxu0 0.0
  %100 = vmatprep.subr.mxu0 0.0
  %101 = vmatpush1.msra.mxu0 0.0
  %102 = vmatprep.subr.mxu0 0.0
  %103 = vmatpush1.msra.mxu0 0.0
  %104 = vmatprep.subr.mxu0 0.0
  %105 = vmatpush1.msra.mxu0 0.0
  %106 = vmatprep.subr.mxu0 0.0
  %107 = vmatpush1.msra.mxu0 0.0
  %108 = vmatprep.mubr.f32.mxu0 0.0
  %109 = vmatmul.mubr.f32.gmra.mrb[0].mxu0 %v42
  %v110 = vpop.f32.mrb[0].mxu0
  %v111 = vadd.f32 0.0, %v110
  %v112 = vpop.f32.mrb[0].mxu0
  %113 = vdwg.mxu0
  %vm114 = vcmask 195584
  %v116 = vsel %vm114, %v34, 0
  %118 = vmatprep.subr.mxu0 0.0
  %119 = vmatpush1.msra.mxu0 %v35
  %120 = vmatprep.subr.mxu0 0.0
  %121 = vmatpush1.msra.mxu0 %v36
  %122 = vmatprep.subr.mxu0 0.0
  %123 = vmatpush1.msra.mxu0 %v37
  %124 = vmatprep.subr.mxu0 0.0
  %125 = vmatpush1.msra.mxu0 0.0
  %126 = vmatprep.subr.mxu0 0.0
  %127 = vmatpush1.msra.mxu0 0.0
  %128 = vmatprep.subr.mxu0 0.0
  %129 = vmatpush1.msra.mxu0 0.0
  %130 = vmatprep.subr.mxu0 0.0
  %131 = vmatpush1.msra.mxu0 0.0
  %132 = vmatprep.subr.mxu0 0.0
  %133 = vmatpush1.msra.mxu0 0.0
  %134 = vmatprep.subr.mxu0 0.0
  %135 = vmatpush1.msra.mxu0 0.0
  %136 = vmatprep.subr.mxu0 0.0
  %137 = vmatpush1.msra.mxu0 0.0
  %138 = vmatprep.subr.mxu0 0.0
  %139 = vmatpush1.msra.mxu0 0.0
  %140 = vmatprep.subr.mxu0 0.0
  %141 = vmatpush1.msra.mxu0 0.0
  %142 = vmatprep.subr.mxu0 0.0
  %143 = vmatpush1.msra.mxu0 0.0
  %144 = vmatprep.subr.mxu0 0.0
  %145 = vmatpush1.msra.mxu0 0.0
  %146 = vmatprep.subr.mxu0 0.0
  %147 = vmatpush1.msra.mxu0 0.0
  %148 = vmatprep.subr.mxu0 0.0
  %149 = vmatpush1.msra.mxu0 0.0
  %150 = vmatprep.subr.mxu0 0.0
  %151 = vmatpush1.msra.mxu0 0.0
  %152 = vmatprep.subr.mxu0 0.0
  %153 = vmatpush1.msra.mxu0 0.0
  %154 = vmatprep.subr.mxu0 0.0
  %155 = vmatpush1.msra.mxu0 0.0
  %156 = vmatprep.subr.mxu0 0.0
  %157 = vmatpush1.msra.mxu0 0.0
  %158 = vmatprep.subr.mxu0 0.0
  %159 = vmatpush1.msra.mxu0 0.0
  %160 = vmatprep.subr.mxu0 0.0
  %161 = vmatpush1.msra.mxu0 0.0
  %162 = vmatprep.subr.mxu0 0.0
  %163 = vmatpush1.msra.mxu0 0.0
  %164 = vmatprep.subr.mxu0 0.0
  %165 = vmatpush1.msra.mxu0 0.0
  %166 = vmatprep.subr.mxu0 0.0
  %167 = vmatpush1.msra.mxu0 0.0
  %168 = vmatprep.subr.mxu0 0.0
  %169 = vmatpush1.msra.mxu0 0.0
  %170 = vmatprep.subr.mxu0 0.0
  %171 = vmatpush1.msra.mxu0 0.0
  %172 = vmatprep.subr.mxu0 0.0
  %173 = vmatpush1.msra.mxu0 0.0
  %174 = vmatprep.subr.mxu0 0.0
  %175 = vmatpush1.msra.mxu0 0.0
  %176 = vmatprep.subr.mxu0 0.0
  %177 = vmatpush1.msra.mxu0 0.0
  %178 = vmatprep.subr.mxu0 0.0
  %179 = vmatpush1.msra.mxu0 0.0
  %180 = vmatprep.subr.mxu0 0.0
  %181 = vmatpush1.msra.mxu0 0.0
  %182 = vmatprep.mubr.f32.mxu0 0.0
  %183 = vmatmul.mubr.f32.gmra.mrb[0].mxu0 %v116
  %v184 = vpop.f32.mrb[0].mxu0
  %v185 = vadd.f32 %v111, %v184
  %v186 = vpop.f32.mrb[0].mxu0
  %187 = vdwg.mxu0
  %v188 = vld [vmem:[%s4] sm:$0x1]
  %v190 = vlaneseq
  %v191 = vshrl.u32 %v190, 7
  %v192 = vsub.s32 0, %v191
  %v193 = vrot.slane %v188, %v192
  %v195 = vadd.f32 %v185, %v193
  %v196 = vmax.f32 %v195, 0.0
  %v197 = vld [vmem:[%s5] sm:$0xff]
  %v198 = vld [vmem:[%s5 + $0x8] sm:$0xff]
  %v199 = vld [vmem:[%s5 + $0x10] sm:$0xff]
  %v200 = vld [vmem:[%s5 + $0x18] sm:$0xff]
  %v201 = vld [vmem:[%s6] sm:$0x1]
  %v203 = vlaneseq
  %v204 = vshrl.u32 %v203, 7
  %v205 = vsub.s32 0, %v204
  %v206 = vrot.slane %v201, %v205
  %vm208 = vcmask 261120
  %v210 = vsel %vm208, %v196, 0
  %212 = vmatprep.subr.mxu0 0.0
  %213 = vmatpush1.msra.mxu0 %v197
  %214 = vmatprep.subr.mxu0 0.0
  %215 = vmatpush1.msra.mxu0 %v198
  %216 = vmatprep.subr.mxu0 0.0
  %217 = vmatpush1.msra.mxu0 %v199
  %218 = vmatprep.subr.mxu0 0.0
  %219 = vmatpush1.msra.mxu0 %v200
  %220 = vmatprep.subr.mxu0 0.0
  %221 = vmatpush1.msra.mxu0 0.0
  %222 = vmatprep.subr.mxu0 0.0
  %223 = vmatpush1.msra.mxu0 0.0
  %224 = vmatprep.subr.mxu0 0.0
  %225 = vmatpush1.msra.mxu0 0.0
  %226 = vmatprep.subr.mxu0 0.0
  %227 = vmatpush1.msra.mxu0 0.0
  %228 = vmatprep.subr.mxu0 0.0
  %229 = vmatpush1.msra.mxu0 0.0
  %230 = vmatprep.subr.mxu0 0.0
  %231 = vmatpush1.msra.mxu0 0.0
  %232 = vmatprep.subr.mxu0 0.0
  %233 = vmatpush1.msra.mxu0 0.0
  %234 = vmatprep.subr.mxu0 0.0
  %235 = vmatpush1.msra.mxu0 0.0
  %236 = vmatprep.subr.mxu0 0.0
  %237 = vmatpush1.msra.mxu0 0.0
  %238 = vmatprep.subr.mxu0 0.0
  %239 = vmatpush1.msra.mxu0 0.0
  %240 = vmatprep.subr.mxu0 0.0
  %241 = vmatpush1.msra.mxu0 0.0
  %242 = vmatprep.subr.mxu0 0.0
  %243 = vmatpush1.msra.mxu0 0.0
  %244 = vmatprep.subr.mxu0 0.0
  %245 = vmatpush1.msra.mxu0 0.0
  %246 = vmatprep.subr.mxu0 0.0
  %247 = vmatpush1.msra.mxu0 0.0
  %248 = vmatprep.subr.mxu0 0.0
  %249 = vmatpush1.msra.mxu0 0.0
  %250 = vmatprep.subr.mxu0 0.0
  %251 = vmatpush1.msra.mxu0 0.0
  %252 = vmatprep.subr.mxu0 0.0
  %253 = vmatpush1.msra.mxu0 0.0
  %254 = vmatprep.subr.mxu0 0.0
  %255 = vmatpush1.msra.mxu0 0.0
  %256 = vmatprep.subr.mxu0 0.0
  %257 = vmatpush1.msra.mxu0 0.0
  %258 = vmatprep.subr.mxu0 0.0
  %259 = vmatpush1.msra.mxu0 0.0
  %260 = vmatprep.subr.mxu0 0.0
  %261 = vmatpush1.msra.mxu0 0.0
  %262 = vmatprep.subr.mxu0 0.0
  %263 = vmatpush1.msra.mxu0 0.0
  %264 = vmatprep.subr.mxu0 0.0
  %265 = vmatpush1.msra.mxu0 0.0
  %266 = vmatprep.subr.mxu0 0.0
  %267 = vmatpush1.msra.mxu0 0.0
  %268 = vmatprep.subr.mxu0 0.0
  %269 = vmatpush1.msra.mxu0 0.0
  %270 = vmatprep.subr.mxu0 0.0
  %271 = vmatpush1.msra.mxu0 0.0
  %272 = vmatprep.subr.mxu0 0.0
  %273 = vmatpush1.msra.mxu0 0.0
  %274 = vmatprep.subr.mxu0 0.0
  %275 = vmatpush1.msra.mxu0 0.0
  %276 = vmatprep.mubr.f32.mxu0 0.0
  %277 = vmatmul.mubr.f32.gmra.mrb[0].mxu0 %v210
  %v278 = vpop.f32.mrb[0].mxu0
  %v279 = vadd.f32 %v206, %v278
  %v280 = vpop.f32.mrb[0].mxu0
  %281 = vdwg.mxu0
  %v282 = vmax.f32 %v279, 0.0
  %v283 = vld [vmem:[%s7] sm:$0xff]
  %v284 = vld [vmem:[%s7 + $0x8] sm:$0xff]
  %v285 = vld [vmem:[%s7 + $0x10] sm:$0xff]
  %v286 = vld [vmem:[%s7 + $0x18] sm:$0xff]
  %v287 = vld [vmem:[#allocation2] sm:$0x1]
  %v289 = vlaneseq
  %v290 = vshrl.u32 %v289, 7
  %v291 = vsub.s32 0, %v290
  %v292 = vrot.slane %v287, %v291
  %v295 = vsel %vm208, %v282, 0
  %297 = vmatprep.subr.mxu0 0.0
  %298 = vmatpush1.msra.mxu0 %v283
  %299 = vmatprep.subr.mxu0 0.0
  %300 = vmatpush1.msra.mxu0 %v284
  %301 = vmatprep.subr.mxu0 0.0
  %302 = vmatpush1.msra.mxu0 %v285
  %303 = vmatprep.subr.mxu0 0.0
  %304 = vmatpush1.msra.mxu0 %v286
  %305 = vmatprep.subr.mxu0 0.0
  %306 = vmatpush1.msra.mxu0 0.0
  %307 = vmatprep.subr.mxu0 0.0
  %308 = vmatpush1.msra.mxu0 0.0
  %309 = vmatprep.subr.mxu0 0.0
  %310 = vmatpush1.msra.mxu0 0.0
  %311 = vmatprep.subr.mxu0 0.0
  %312 = vmatpush1.msra.mxu0 0.0
  %313 = vmatprep.subr.mxu0 0.0
  %314 = vmatpush1.msra.mxu0 0.0
  %315 = vmatprep.subr.mxu0 0.0
  %316 = vmatpush1.msra.mxu0 0.0
  %317 = vmatprep.subr.mxu0 0.0
  %318 = vmatpush1.msra.mxu0 0.0
  %319 = vmatprep.subr.mxu0 0.0
  %320 = vmatpush1.msra.mxu0 0.0
  %321 = vmatprep.subr.mxu0 0.0
  %322 = vmatpush1.msra.mxu0 0.0
  %323 = vmatprep.subr.mxu0 0.0
  %324 = vmatpush1.msra.mxu0 0.0
  %325 = vmatprep.subr.mxu0 0.0
  %326 = vmatpush1.msra.mxu0 0.0
  %327 = vmatprep.subr.mxu0 0.0
  %328 = vmatpush1.msra.mxu0 0.0
  %329 = vmatprep.subr.mxu0 0.0
  %330 = vmatpush1.msra.mxu0 0.0
  %331 = vmatprep.subr.mxu0 0.0
  %332 = vmatpush1.msra.mxu0 0.0
  %333 = vmatprep.subr.mxu0 0.0
  %334 = vmatpush1.msra.mxu0 0.0
  %335 = vmatprep.subr.mxu0 0.0
  %336 = vmatpush1.msra.mxu0 0.0
  %337 = vmatprep.subr.mxu0 0.0
  %338 = vmatpush1.msra.mxu0 0.0
  %339 = vmatprep.subr.mxu0 0.0
  %340 = vmatpush1.msra.mxu0 0.0
  %341 = vmatprep.subr.mxu0 0.0
  %342 = vmatpush1.msra.mxu0 0.0
  %343 = vmatprep.subr.mxu0 0.0
  %344 = vmatpush1.msra.mxu0 0.0
  %345 = vmatprep.subr.mxu0 0.0
  %346 = vmatpush1.msra.mxu0 0.0
  %347 = vmatprep.subr.mxu0 0.0
  %348 = vmatpush1.msra.mxu0 0.0
  %349 = vmatprep.subr.mxu0 0.0
  %350 = vmatpush1.msra.mxu0 0.0
  %351 = vmatprep.subr.mxu0 0.0
  %352 = vmatpush1.msra.mxu0 0.0
  %353 = vmatprep.subr.mxu0 0.0
  %354 = vmatpush1.msra.mxu0 0.0
  %355 = vmatprep.subr.mxu0 0.0
  %356 = vmatpush1.msra.mxu0 0.0
  %357 = vmatprep.subr.mxu0 0.0
  %358 = vmatpush1.msra.mxu0 0.0
  %359 = vmatprep.subr.mxu0 0.0
  %360 = vmatpush1.msra.mxu0 0.0
  %361 = vmatprep.mubr.f32.mxu0 0.0
  %362 = vmatmul.mubr.f32.gmra.mrb[0].mxu0 %v295
  %v363 = vpop.f32.mrb[0].mxu0
  %v364 = vadd.f32 %v292, %v363
  %v365 = vpop.f32.mrb[0].mxu0
  %366 = vdwg.mxu0
  %vm367 = vcmask 7168
  %368 = vst.msk [vmem:[%s9] sm:$0xff] %vm367, %v364
  // Predicated region
  $region38: #{critic_forward.1} parent=0 // pred_check
    _
  $region39: #{critic_forward.1} parent=0 // pred_check_branch
    %370 = sbr.rel (0) target = $region41
  $region40: #{critic_forward.1} parent=0 // pred_region
    _
  $region41: #{critic_forward.1} parent=0 // pred_fallthru
    _
  // Predicated region
  $region42: #{critic_forward.1} parent=0 // pred_check
    _
  $region43: #{critic_forward.1} parent=0 // pred_check_branch
    %372 = sbr.rel (0) target = $region45
  $region44: #{critic_forward.1} parent=0 // pred_region
    _
  $region45: #{critic_forward.1} parent=0 // pred_fallthru
    _

</llo_original>
